<compile_context>
chip_gen: v7x
topology: tpu7x:2x2x1
jax: 0.10.0
libtpu: 0.0.40
codegen_flags: <defaults>
</compile_context>

<pallas_src>
import math
import jax
import jax.numpy as jnp
from jax.experimental import pallas as pl
from jax.experimental.pallas import tpu as pltpu

_TILE_B = 256  # batch tile; plenty for the HBM-roofline plateau, safe on v7x's 64 MiB VMEM


def _policy_kernel(x_ref, w1_ref, b12_ref, w2_ref, wh_ref, bh_ref, out_ref):
    # x_ref: [tile_b, obs_dim] bf16, weights bf16, biases f32, out f32 (lane-dense)
    x = x_ref[...]

    # shared MLP: Linear -> ReLU -> Linear -> ReLU  (bf16 MXU operands, f32 epilogue)
    h1 = jnp.dot(x, w1_ref[...], preferred_element_type=jnp.float32) + b12_ref[0:1, :]
    h1 = jnp.maximum(h1, 0.0)
    h2 = (jnp.dot(h1.astype(jnp.bfloat16), w2_ref[...],
                  preferred_element_type=jnp.float32) + b12_ref[1:2, :])
    h2 = jnp.maximum(h2, 0.0)

    # fused policy+value head: single lane-dense matmul + store
    out_ref[...] = (jnp.dot(h2.astype(jnp.bfloat16), wh_ref[...],
                            preferred_element_type=jnp.float32) + bh_ref[...])


def policy_net_forward(x, params):
    """PolicyNet forward pass in one Pallas call.

    x: [B, obs_dim] float32
    returns (logits [B, act_dim], value [B]) float32
    """
    w1, b1, w2, b2, wp, bp, wv, bv = params
    B, obs_dim = x.shape
    hidden = w1.shape[1]
    act_dim = wp.shape[1]
    n_head = act_dim + 1
    n_pad = pl.cdiv(n_head, 128) * 128          # lane-dense fused head width

    # --- fuse the two heads into one padded weight / bias ------------------
    wh = jnp.concatenate(
        [wp, wv, jnp.zeros((hidden, n_pad - n_head), jnp.float32)], axis=1)
    bh = jnp.concatenate(
        [bp, bv, jnp.zeros((1, n_pad - n_head), jnp.float32)], axis=1)
    b12 = jnp.concatenate([b1, b2], axis=0)      # [2, hidden] f32

    # --- pad the batch to a multiple of the batch tile ----------------------
    b_sub = ((B + 7) // 8) * 8                   # sublane-align
    tile_b = min(_TILE_B, b_sub)
    b_pad = ((b_sub + tile_b - 1) // tile_b) * tile_b
    if b_pad != B:
        x = jnp.pad(x, ((0, b_pad - B), (0, 0)))

    # --- bf16 MXU operands (halves operand HBM bytes; f32 accumulate inside) --
    x_bf = x.astype(jnp.bfloat16)
    w1_bf = w1.astype(jnp.bfloat16)
    w2_bf = w2.astype(jnp.bfloat16)
    wh_bf = wh.astype(jnp.bfloat16)

    grid = (b_pad // tile_b,)

    flops = 2 * b_pad * (obs_dim * hidden + hidden * hidden + hidden * n_pad)
    bytes_accessed = (x_bf.size * 2 + w1_bf.size * 2 + w2_bf.size * 2
                      + wh_bf.size * 2 + b12.size * 4 + bh.size * 4
                      + b_pad * n_pad * 4)

    def resident(shape):
        # weights/biases: same block every grid step -> fetched once, stay in VMEM
        return pl.BlockSpec(shape, lambda i: tuple(0 for _ in shape))

    out = pl.pallas_call(
        _policy_kernel,
        out_shape=jax.ShapeDtypeStruct((b_pad, n_pad), jnp.float32),
        grid=grid,
        in_specs=[
            pl.BlockSpec((tile_b, obs_dim), lambda i: (i, 0)),   # x: tiled over batch
            resident((obs_dim, hidden)),                         # w1
            resident((2, hidden)),                               # b1/b2 stacked
            resident((hidden, hidden)),                          # w2
            resident((hidden, n_pad)),                           # fused head weight
            resident((1, n_pad)),                                # fused head bias
        ],
        out_specs=pl.BlockSpec((tile_b, n_pad), lambda i: (i, 0)),
        compiler_params=pltpu.CompilerParams(
            dimension_semantics=("parallel",)),
        cost_estimate=pl.CostEstimate(
            flops=flops, transcendentals=0, bytes_accessed=bytes_accessed),
    )(x_bf, w1_bf, b12, w2_bf, wh_bf, bh)

    # split fused head + .squeeze(-1) in plain JAX glue (shape-only ops)
    logits = out[:B, :act_dim]
    value = out[:B, act_dim]
    return logits, value


def init_params(key, obs_dim, act_dim, hidden=128):
    """Deterministic init mimicking PyTorch's default Linear init
    (uniform in [-1/sqrt(fan_in), 1/sqrt(fan_in)]). Weights stored [in, out]."""
    def linear(k, fan_in, fan_out):
        kw, kb = jax.random.split(k)
        bound = 1.0 / math.sqrt(fan_in)
        w = jax.random.uniform(kw, (fan_in, fan_out), jnp.float32, -bound, bound)
        b = jax.random.uniform(kb, (1, fan_out), jnp.float32, -bound, bound)
        return w, b

    k1, k2, k3, k4 = jax.random.split(key, 4)
    w1, b1 = linear(k1, obs_dim, hidden)
    w2, b2 = linear(k2, hidden, hidden)
    wp, bp = linear(k3, hidden, act_dim)
    wv, bv = linear(k4, hidden, 1)
    return (w1, b1, w2, b2, wp, bp, wv, bv)


def _reference_forward(x, params):
    # pure-f32 JAX reference (PyTorch semantics)
    w1, b1, w2, b2, wp, bp, wv, bv = params
    h = jnp.maximum(x @ w1 + b1, 0.0)
    h = jnp.maximum(h @ w2 + b2, 0.0)
    return h @ wp + bp, (h @ wv + bv)[:, 0]


if __name__ == "__main__":
    # LunarLander-v2: obs_dim=8, act_dim=4. Small batch.
    B, OBS_DIM, ACT_DIM = 8, 8, 4

    key = jax.random.PRNGKey(0)
    kx, kp = jax.random.split(key)
    x = jax.random.normal(kx, (B, OBS_DIM), dtype=jnp.float32)
    params = init_params(kp, OBS_DIM, ACT_DIM)

    logits, value = jax.jit(policy_net_forward)(x, params)
    jax.block_until_ready((logits, value))

    # sanity check against pure-f32 JAX reference (bf16 operands -> looser tol)
    ref_logits, ref_value = _reference_forward(x, params)
    assert logits.shape == (B, ACT_DIM) and value.shape == (B,)
    assert jnp.allclose(logits, ref_logits, atol=5e-2, rtol=5e-2)
    assert jnp.allclose(value, ref_value, atol=5e-2, rtol=5e-2)

    print("KERNEL_OK")
</pallas_src>

<mosaic_0001>
module attributes {stable_mosaic.version = 11 : i64} {
  func.func @_policy_kernel(%arg0: i32, %arg1: memref<8x8xbf16, #tpu.memory_space<vmem>>, %arg2: memref<8x128xbf16, #tpu.memory_space<vmem>>, %arg3: memref<2x128xf32, #tpu.memory_space<vmem>>, %arg4: memref<128x128xbf16, #tpu.memory_space<vmem>>, %arg5: memref<128x128xbf16, #tpu.memory_space<vmem>>, %arg6: memref<1x128xf32, #tpu.memory_space<vmem>>, %arg7: memref<8x128xf32, #tpu.memory_space<vmem>>) attributes {dimension_semantics = [#tpu.dimension_semantics<parallel>], iteration_bounds = array<i64: 1>, scalar_prefetch = 0 : i64, scratch_operands = 0 : i64, tpu.core_type = #tpu.core_type<tc>, window_params = [{transform_indices = @transform_0, window_bounds = array<i64: 8, 8>}, {pipeline_mode = #tpu.pipeline_mode<synchronous>, transform_indices = @transform_1, window_bounds = array<i64: 8, 128>}, {pipeline_mode = #tpu.pipeline_mode<synchronous>, transform_indices = @transform_2, window_bounds = array<i64: 2, 128>}, {pipeline_mode = #tpu.pipeline_mode<synchronous>, transform_indices = @transform_3, window_bounds = array<i64: 128, 128>}, {pipeline_mode = #tpu.pipeline_mode<synchronous>, transform_indices = @transform_4, window_bounds = array<i64: 128, 128>}, {pipeline_mode = #tpu.pipeline_mode<synchronous>, transform_indices = @transform_5, window_bounds = array<i64: 1, 128>}, {transform_indices = @transform_6, window_bounds = array<i64: 8, 128>}]} {
    %c0 = arith.constant 0 : index
    %c0_0 = arith.constant 0 : index
    %0 = vector.load %arg1[%c0, %c0_0] : memref<8x8xbf16, #tpu.memory_space<vmem>>, vector<8x8xbf16>
    %c0_1 = arith.constant 0 : index
    %c0_2 = arith.constant 0 : index
    %1 = vector.load %arg2[%c0_1, %c0_2] : memref<8x128xbf16, #tpu.memory_space<vmem>>, vector<8x128xbf16>
    %cst = arith.constant dense<0.000000e+00> : vector<8x128xf32>
    %2 = tpu.matmul %0, %1, %cst {dimension_numbers = #tpu.dot_dimension_numbers<[1], [0], [0], [1], [0, 0, 1, 1], [], []>} : vector<8x8xbf16>, vector<8x128xbf16>, vector<8x128xf32> -> vector<8x128xf32>
    %c0_3 = arith.constant 0 : index
    %c0_4 = arith.constant 0 : index
    %3 = vector.load %arg3[%c0_3, %c0_4] : memref<2x128xf32, #tpu.memory_space<vmem>>, vector<1x128xf32>
    %4 = vector.broadcast %3 : vector<1x128xf32> to vector<8x128xf32>
    %5 = arith.addf %2, %4 : vector<8x128xf32>
    %cst_5 = arith.constant 0.000000e+00 : f32
    %6 = vector.broadcast %cst_5 : f32 to vector<8x128xf32>
    %7 = arith.maximumf %5, %6 : vector<8x128xf32>
    %8 = arith.truncf %7 : vector<8x128xf32> to vector<8x128xbf16>
    %c0_6 = arith.constant 0 : index
    %c0_7 = arith.constant 0 : index
    %9 = vector.load %arg4[%c0_6, %c0_7] : memref<128x128xbf16, #tpu.memory_space<vmem>>, vector<128x128xbf16>
    %cst_8 = arith.constant dense<0.000000e+00> : vector<8x128xf32>
    %10 = tpu.matmul %8, %9, %cst_8 {dimension_numbers = #tpu.dot_dimension_numbers<[1], [0], [0], [1], [0, 0, 1, 1], [], []>} : vector<8x128xbf16>, vector<128x128xbf16>, vector<8x128xf32> -> vector<8x128xf32>
    %c1 = arith.constant 1 : index
    %c0_9 = arith.constant 0 : index
    %11 = vector.load %arg3[%c1, %c0_9] : memref<2x128xf32, #tpu.memory_space<vmem>>, vector<1x128xf32>
    %12 = vector.broadcast %11 : vector<1x128xf32> to vector<8x128xf32>
    %13 = arith.addf %10, %12 : vector<8x128xf32>
    %cst_10 = arith.constant 0.000000e+00 : f32
    %14 = vector.broadcast %cst_10 : f32 to vector<8x128xf32>
    %15 = arith.maximumf %13, %14 : vector<8x128xf32>
    %16 = arith.truncf %15 : vector<8x128xf32> to vector<8x128xbf16>
    %c0_11 = arith.constant 0 : index
    %c0_12 = arith.constant 0 : index
    %17 = vector.load %arg5[%c0_11, %c0_12] : memref<128x128xbf16, #tpu.memory_space<vmem>>, vector<128x128xbf16>
    %cst_13 = arith.constant dense<0.000000e+00> : vector<8x128xf32>
    %18 = tpu.matmul %16, %17, %cst_13 {dimension_numbers = #tpu.dot_dimension_numbers<[1], [0], [0], [1], [0, 0, 1, 1], [], []>} : vector<8x128xbf16>, vector<128x128xbf16>, vector<8x128xf32> -> vector<8x128xf32>
    %c0_14 = arith.constant 0 : index
    %c0_15 = arith.constant 0 : index
    %19 = vector.load %arg6[%c0_14, %c0_15] : memref<1x128xf32, #tpu.memory_space<vmem>>, vector<1x128xf32>
    %20 = vector.broadcast %19 : vector<1x128xf32> to vector<8x128xf32>
    %21 = arith.addf %18, %20 : vector<8x128xf32>
    %c0_16 = arith.constant 0 : index
    %c0_17 = arith.constant 0 : index
    %22 = vector.load %arg7[%c0_16, %c0_17] : memref<8x128xf32, #tpu.memory_space<vmem>>, vector<8x128xf32>
    tpu.vector_store %arg7[%c0_16, %c0_17], %21 {strides = array<i32>} : memref<8x128xf32, #tpu.memory_space<vmem>>, vector<8x128xf32>,
    return
  }
  func.func @transform_0(%arg0: i32) -> (i32, i32) {
    %c0_i32 = arith.constant 0 : i32
    %c0_i32_0 = arith.constant 0 : i32
    return %arg0, %c0_i32 : i32, i32
  }
  func.func @transform_1(%arg0: i32) -> (i32, i32) {
    %c0_i32 = arith.constant 0 : i32
    %c0_i32_0 = arith.constant 0 : i32
    %c0_i32_1 = arith.constant 0 : i32
    return %c0_i32, %c0_i32_0 : i32, i32
  }
  func.func @transform_2(%arg0: i32) -> (i32, i32) {
    %c0_i32 = arith.constant 0 : i32
    %c0_i32_0 = arith.constant 0 : i32
    %c0_i32_1 = arith.constant 0 : i32
    return %c0_i32, %c0_i32_0 : i32, i32
  }
  func.func @transform_3(%arg0: i32) -> (i32, i32) {
    %c0_i32 = arith.constant 0 : i32
    %c0_i32_0 = arith.constant 0 : i32
    %c0_i32_1 = arith.constant 0 : i32
    return %c0_i32, %c0_i32_0 : i32, i32
  }
  func.func @transform_4(%arg0: i32) -> (i32, i32) {
    %c0_i32 = arith.constant 0 : i32
    %c0_i32_0 = arith.constant 0 : i32
    %c0_i32_1 = arith.constant 0 : i32
    return %c0_i32, %c0_i32_0 : i32, i32
  }
  func.func @transform_5(%arg0: i32) -> (i32, i32) {
    %c0_i32 = arith.constant 0 : i32
    %c0_i32_0 = arith.constant 0 : i32
    %c0_i32_1 = arith.constant 0 : i32
    return %c0_i32, %c0_i32_0 : i32, i32
  }
  func.func @transform_6(%arg0: i32) -> (i32, i32) {
    %c0_i32 = arith.constant 0 : i32
    %c0_i32_0 = arith.constant 0 : i32
    return %arg0, %c0_i32 : i32, i32
  }
}

</mosaic_0001>

<llo_original>
// kernel: policy_net_forward.1
$region0: #{policy_net_forward.1}
  #allocation0 [shape = 'u32[]', space=smem, size = 0x4, offset = 0x4, fixed_abs, tag = 'smem constant byte address 0x4 - core index']
  #allocation1 [shape = 'u32[144,128]{1,0:T(1,128)}', space=vmem, size = 0x12000, scoped, tag = 'internal scratch']
  %s0 = inlined_call_operand.vmem [shape: bf16[8,8], index: 0, kind: input, shape index: {}]
  %s1 = inlined_call_operand.vmem [shape: bf16[8,128], index: 1, kind: input, shape index: {}]
  %s2 = inlined_call_operand.vmem [shape: f32[2,128], index: 2, kind: input, shape index: {}]
  %s3 = inlined_call_operand.vmem [shape: bf16[128,128], index: 3, kind: input, shape index: {}]
  %s4 = inlined_call_operand.vmem [shape: bf16[128,128], index: 4, kind: input, shape index: {}]
  %s5 = inlined_call_operand.vmem [shape: f32[1,128], index: 5, kind: input, shape index: {}]
  %s6 = inlined_call_operand.vmem [shape: f32[8,128], index: 6, kind: output, shape index: {}]
  %s7 = sld [smem:[#allocation0]]
  $region34: #{policy_net_forward.1} parent=0
    _
  %s9 = ssub.s32 1, %s7
  %s10 = scalar_select 0, %s9, %s7
  // Predicated region
  $region2: #{policy_net_forward.1} parent=0 // pred_check
    _
  $region3: #{policy_net_forward.1} parent=0 // pred_check_branch
    %12 = sbr.rel (0) target = $region5
  $region4: #{policy_net_forward.1} parent=0 // pred_region
    _
  $region5: #{policy_net_forward.1} parent=0 // pred_fallthru
    _
  // Predicated region
  $region6: #{policy_net_forward.1} parent=0 // pred_check
    _
  $region7: #{policy_net_forward.1} parent=0 // pred_check_branch
    %14 = sbr.rel (0) target = $region9
  $region8: #{policy_net_forward.1} parent=0 // pred_region
    _
  $region9: #{policy_net_forward.1} parent=0 // pred_fallthru
    _
  // Predicated region
  $region10: #{policy_net_forward.1} parent=0 // pred_check
    _
  $region11: #{policy_net_forward.1} parent=0 // pred_check_branch
    %16 = sbr.rel (0) target = $region13
  $region12: #{policy_net_forward.1} parent=0 // pred_region
    _
  $region13: #{policy_net_forward.1} parent=0 // pred_fallthru
    _
  // Predicated region
  $region14: #{policy_net_forward.1} parent=0 // pred_check
    _
  $region15: #{policy_net_forward.1} parent=0 // pred_check_branch
    %18 = sbr.rel (0) target = $region17
  $region16: #{policy_net_forward.1} parent=0 // pred_region
    _
  $region17: #{policy_net_forward.1} parent=0 // pred_fallthru
    _
  // Predicated region
  $region18: #{policy_net_forward.1} parent=0 // pred_check
    _
  $region19: #{policy_net_forward.1} parent=0 // pred_check_branch
    %20 = sbr.rel (0) target = $region21
  $region20: #{policy_net_forward.1} parent=0 // pred_region
    _
  $region21: #{policy_net_forward.1} parent=0 // pred_fallthru
    _
  // Predicated region
  $region22: #{policy_net_forward.1} parent=0 // pred_check
    _
  $region23: #{policy_net_forward.1} parent=0 // pred_check_branch
    %22 = sbr.rel (0) target = $region25
  $region24: #{policy_net_forward.1} parent=0 // pred_region
    _
  $region25: #{policy_net_forward.1} parent=0 // pred_fallthru
    _
  %v24 = vld [vmem:[%s0] sm:$0xf]
  %v25 = vld [vmem:[%s1] sm:$0xf]
  %v26 = vld [vmem:[%s2] sm:$0x1]
  %v27 = vlaneseq
  %v28 = vshrl.u32 %v27, 7
  %v29 = vsub.s32 0, %v28
  %v30 = vrot.slane %v26, %v29
  %vm31 = vcmask 64512
  %v33 = vsel %vm31, %v24, 0
  %vm35 = vcmask 1043456
  %v37 = vsel %vm35, %v25, 0
  %39 = vmatprep.subr.bf16.mxu0 0
  %40 = vmatpush1.bf16.msra.mxu0 %v37
  %41 = vmatprep.subr.bf16.mxu0 0
  %42 = vmatpush1.bf16.msra.mxu0 0
  %43 = vmatprep.subr.bf16.mxu0 0
  %44 = vmatpush1.bf16.msra.mxu0 0
  %45 = vmatprep.subr.bf16.mxu0 0
  %46 = vmatpush1.bf16.msra.mxu0 0
  %47 = vmatprep.subr.bf16.mxu0 0
  %48 = vmatpush1.bf16.msra.mxu0 0
  %49 = vmatprep.subr.bf16.mxu0 0
  %50 = vmatpush1.bf16.msra.mxu0 0
  %51 = vmatprep.subr.bf16.mxu0 0
  %52 = vmatpush1.bf16.msra.mxu0 0
  %53 = vmatprep.subr.bf16.mxu0 0
  %54 = vmatpush1.bf16.msra.mxu0 0
  %55 = vmatprep.subr.bf16.mxu0 0
  %56 = vmatpush1.bf16.msra.mxu0 0
  %57 = vmatprep.subr.bf16.mxu0 0
  %58 = vmatpush1.bf16.msra.mxu0 0
  %59 = vmatprep.subr.bf16.mxu0 0
  %60 = vmatpush1.bf16.msra.mxu0 0
  %61 = vmatprep.subr.bf16.mxu0 0
  %62 = vmatpush1.bf16.msra.mxu0 0
  %63 = vmatprep.subr.bf16.mxu0 0
  %64 = vmatpush1.bf16.msra.mxu0 0
  %65 = vmatprep.subr.bf16.mxu0 0
  %66 = vmatpush1.bf16.msra.mxu0 0
  %67 = vmatprep.subr.bf16.mxu0 0
  %68 = vmatpush1.bf16.msra.mxu0 0
  %69 = vmatprep.subr.bf16.mxu0 0
  %70 = vmatpush1.bf16.msra.mxu0 0
  %71 = vmatprep.mubr.bf16.mxu0 0
  %72 = vmatmul.mubr.bf16.gmra.mrb[0].mxu0 %v33
  %v73 = vpop.f32.mrb[0].mxu0
  %v74 = vadd.f32 %v30, %v73
  %v75 = vpop.f32.mrb[0].mxu0
  %v76 = vpop.f32.mrb[0].mxu0
  %v77 = vpop.f32.mrb[0].mxu0
  %78 = vdwg.mxu0
  %v79 = vmax.f32 %v74, 0.0
  %v80 = vpack.c.bf16 %v79, %v79
  %v81 = vld [vmem:[%s3] sm:$0xf]
  %v82 = vld [vmem:[%s3 + $0x4] sm:$0xf]
  %v83 = vld [vmem:[%s3 + $0x8] sm:$0xf]
  %v84 = vld [vmem:[%s3 + $0xc] sm:$0xf]
  %v85 = vld [vmem:[%s3 + $0x10] sm:$0xf]
  %v86 = vld [vmem:[%s3 + $0x14] sm:$0xf]
  %v87 = vld [vmem:[%s3 + $0x18] sm:$0xf]
  %v88 = vld [vmem:[%s3 + $0x1c] sm:$0xf]
  %v89 = vld [vmem:[%s3 + $0x20] sm:$0xf]
  %v90 = vld [vmem:[%s3 + $0x24] sm:$0xf]
  %v91 = vld [vmem:[%s3 + $0x28] sm:$0xf]
  %v92 = vld [vmem:[%s3 + $0x2c] sm:$0xf]
  %v93 = vld [vmem:[%s3 + $0x30] sm:$0xf]
  %v94 = vld [vmem:[%s3 + $0x34] sm:$0xf]
  %v95 = vld [vmem:[%s3 + $0x38] sm:$0xf]
  %v96 = vld [vmem:[%s3 + $0x3c] sm:$0xf]
  %v97 = vld [vmem:[%s2 + $0x1] sm:$0x1]
  %v98 = vlaneseq
  %v99 = vshrl.u32 %v98, 7
  %v100 = vsub.s32 0, %v99
  %v101 = vrot.slane %v97, %v100
  %v118 = vunpack.c.l.b16 %v81
  %v119 = vunpack.c.l.b16 %v82
  %v120 = vunpack.c.l.b16 %v83
  %v121 = vunpack.c.l.b16 %v84
  %v122 = vunpack.c.l.b16 %v85
  %v123 = vunpack.c.l.b16 %v86
  %v124 = vunpack.c.l.b16 %v87
  %v125 = vunpack.c.l.b16 %v88
  %v126 = vunpack.c.l.b16 %v89
  %v127 = vunpack.c.l.b16 %v90
  %v128 = vunpack.c.l.b16 %v91
  %v129 = vunpack.c.l.b16 %v92
  %v130 = vunpack.c.l.b16 %v93
  %v131 = vunpack.c.l.b16 %v94
  %v132 = vunpack.c.l.b16 %v95
  %v133 = vunpack.c.l.b16 %v96
  %v134 = vpack.c.b16 %v119, %v118
  %v135 = vpack.c.b16 %v121, %v120
  %v136 = vpack.c.b16 %v123, %v122
  %v137 = vpack.c.b16 %v125, %v124
  %v138 = vpack.c.b16 %v127, %v126
  %v139 = vpack.c.b16 %v129, %v128
  %v140 = vpack.c.b16 %v131, %v130
  %v141 = vpack.c.b16 %v133, %v132
  %150 = vmatprep.subr.bf16.mxu0 0
  %151 = vmatpush1.bf16.msra.mxu0 %v134
  %152 = vmatprep.subr.bf16.mxu0 0
  %153 = vmatpush1.bf16.msra.mxu0 %v135
  %154 = vmatprep.subr.bf16.mxu0 0
  %155 = vmatpush1.bf16.msra.mxu0 %v136
  %156 = vmatprep.subr.bf16.mxu0 0
  %157 = vmatpush1.bf16.msra.mxu0 %v137
  %158 = vmatprep.subr.bf16.mxu0 0
  %159 = vmatpush1.bf16.msra.mxu0 %v138
  %160 = vmatprep.subr.bf16.mxu0 0
  %161 = vmatpush1.bf16.msra.mxu0 %v139
  %162 = vmatprep.subr.bf16.mxu0 0
  %163 = vmatpush1.bf16.msra.mxu0 %v140
  %164 = vmatprep.subr.bf16.mxu0 0
  %165 = vmatpush1.bf16.msra.mxu0 %v141
  %166 = vmatprep.subr.bf16.mxu0 0
  %167 = vmatpush1.bf16.msra.mxu0 0
  %168 = vmatprep.subr.bf16.mxu0 0
  %169 = vmatpush1.bf16.msra.mxu0 0
  %170 = vmatprep.subr.bf16.mxu0 0
  %171 = vmatpush1.bf16.msra.mxu0 0
  %172 = vmatprep.subr.bf16.mxu0 0
  %173 = vmatpush1.bf16.msra.mxu0 0
  %174 = vmatprep.subr.bf16.mxu0 0
  %175 = vmatpush1.bf16.msra.mxu0 0
  %176 = vmatprep.subr.bf16.mxu0 0
  %177 = vmatpush1.bf16.msra.mxu0 0
  %178 = vmatprep.subr.bf16.mxu0 0
  %179 = vmatpush1.bf16.msra.mxu0 0
  %180 = vmatprep.subr.bf16.mxu0 0
  %181 = vmatpush1.bf16.msra.mxu0 0
  %182 = vmatprep.mubr.bf16.mxu0 0
  %183 = vmatmul.mubr.bf16.gmra.mrb[0].mxu0 %v80
  %v184 = vpop.f32.mrb[0].mxu0
  %v185 = vadd.f32 %v101, %v184
  %v186 = vpop.f32.mrb[0].mxu0
  %v187 = vpop.f32.mrb[0].mxu0
  %v188 = vpop.f32.mrb[0].mxu0
  %189 = vdwg.mxu0
  %v190 = vmax.f32 %v185, 0.0
  %v191 = vpack.c.bf16 %v190, %v190
  %v192 = vld [vmem:[%s4] sm:$0xf]
  %v193 = vld [vmem:[%s4 + $0x4] sm:$0xf]
  %v194 = vld [vmem:[%s4 + $0x8] sm:$0xf]
  %v195 = vld [vmem:[%s4 + $0xc] sm:$0xf]
  %v196 = vld [vmem:[%s4 + $0x10] sm:$0xf]
  %v197 = vld [vmem:[%s4 + $0x14] sm:$0xf]
  %v198 = vld [vmem:[%s4 + $0x18] sm:$0xf]
  %v199 = vld [vmem:[%s4 + $0x1c] sm:$0xf]
  %v200 = vld [vmem:[%s4 + $0x20] sm:$0xf]
  %v201 = vld [vmem:[%s4 + $0x24] sm:$0xf]
  %v202 = vld [vmem:[%s4 + $0x28] sm:$0xf]
  %v203 = vld [vmem:[%s4 + $0x2c] sm:$0xf]
  %v204 = vld [vmem:[%s4 + $0x30] sm:$0xf]
  %v205 = vld [vmem:[%s4 + $0x34] sm:$0xf]
  %v206 = vld [vmem:[%s4 + $0x38] sm:$0xf]
  %v207 = vld [vmem:[%s4 + $0x3c] sm:$0xf]
  %v208 = vld [vmem:[%s5] sm:$0x1]
  %v210 = vlaneseq
  %v211 = vshrl.u32 %v210, 7
  %v212 = vsub.s32 0, %v211
  %v213 = vrot.slane %v208, %v212
  %v231 = vunpack.c.l.b16 %v192
  %v232 = vunpack.c.l.b16 %v193
  %v233 = vunpack.c.l.b16 %v194
  %v234 = vunpack.c.l.b16 %v195
  %v235 = vunpack.c.l.b16 %v196
  %v236 = vunpack.c.l.b16 %v197
  %v237 = vunpack.c.l.b16 %v198
  %v238 = vunpack.c.l.b16 %v199
  %v239 = vunpack.c.l.b16 %v200
  %v240 = vunpack.c.l.b16 %v201
  %v241 = vunpack.c.l.b16 %v202
  %v242 = vunpack.c.l.b16 %v203
  %v243 = vunpack.c.l.b16 %v204
  %v244 = vunpack.c.l.b16 %v205
  %v245 = vunpack.c.l.b16 %v206
  %v246 = vunpack.c.l.b16 %v207
  %v247 = vpack.c.b16 %v232, %v231
  %v248 = vpack.c.b16 %v234, %v233
  %v249 = vpack.c.b16 %v236, %v235
  %v250 = vpack.c.b16 %v238, %v237
  %v251 = vpack.c.b16 %v240, %v239
  %v252 = vpack.c.b16 %v242, %v241
  %v253 = vpack.c.b16 %v244, %v243
  %v254 = vpack.c.b16 %v246, %v245
  %263 = vmatprep.subr.bf16.mxu0 0
  %264 = vmatpush1.bf16.msra.mxu0 %v247
  %265 = vmatprep.subr.bf16.mxu0 0
  %266 = vmatpush1.bf16.msra.mxu0 %v248
  %267 = vmatprep.subr.bf16.mxu0 0
  %268 = vmatpush1.bf16.msra.mxu0 %v249
  %269 = vmatprep.subr.bf16.mxu0 0
  %270 = vmatpush1.bf16.msra.mxu0 %v250
  %271 = vmatprep.subr.bf16.mxu0 0
  %272 = vmatpush1.bf16.msra.mxu0 %v251
  %273 = vmatprep.subr.bf16.mxu0 0
  %274 = vmatpush1.bf16.msra.mxu0 %v252
  %275 = vmatprep.subr.bf16.mxu0 0
  %276 = vmatpush1.bf16.msra.mxu0 %v253
  %277 = vmatprep.subr.bf16.mxu0 0
  %278 = vmatpush1.bf16.msra.mxu0 %v254
  %279 = vmatprep.subr.bf16.mxu0 0
  %280 = vmatpush1.bf16.msra.mxu0 0
  %281 = vmatprep.subr.bf16.mxu0 0
  %282 = vmatpush1.bf16.msra.mxu0 0
  %283 = vmatprep.subr.bf16.mxu0 0
  %284 = vmatpush1.bf16.msra.mxu0 0
  %285 = vmatprep.subr.bf16.mxu0 0
  %286 = vmatpush1.bf16.msra.mxu0 0
  %287 = vmatprep.subr.bf16.mxu0 0
  %288 = vmatpush1.bf16.msra.mxu0 0
  %289 = vmatprep.subr.bf16.mxu0 0
  %290 = vmatpush1.bf16.msra.mxu0 0
  %291 = vmatprep.subr.bf16.mxu0 0
  %292 = vmatpush1.bf16.msra.mxu0 0
  %293 = vmatprep.subr.bf16.mxu0 0
  %294 = vmatpush1.bf16.msra.mxu0 0
  %295 = vmatprep.mubr.bf16.mxu0 0
  %296 = vmatmul.mubr.bf16.gmra.mrb[0].mxu0 %v191
  %v297 = vpop.f32.mrb[0].mxu0
  %v298 = vadd.f32 %v213, %v297
  %v299 = vpop.f32.mrb[0].mxu0
  %v300 = vpop.f32.mrb[0].mxu0
  %v301 = vpop.f32.mrb[0].mxu0
  %302 = vdwg.mxu0
  %303 = vst [vmem:[%s6] sm:$0xff] %v298
  // Predicated region
  $region26: #{policy_net_forward.1} parent=0 // pred_check
    _
  $region27: #{policy_net_forward.1} parent=0 // pred_check_branch
    %305 = sbr.rel (0) target = $region29
  $region28: #{policy_net_forward.1} parent=0 // pred_region
    _
  $region29: #{policy_net_forward.1} parent=0 // pred_fallthru
    _
  // Predicated region
  $region30: #{policy_net_forward.1} parent=0 // pred_check
    _
  $region31: #{policy_net_forward.1} parent=0 // pred_check_branch
    %307 = sbr.rel (0) target = $region33
  $region32: #{policy_net_forward.1} parent=0 // pred_region
    _
  $region33: #{policy_net_forward.1} parent=0 // pred_fallthru
    _

</llo_original>
